<compile_context>
chip_gen: v6e
topology: v6e:2x2x1
jax: 0.10.0
libtpu: 0.0.40
codegen_flags: <defaults>
</compile_context>

<pallas_src>
import functools

import jax
import jax.numpy as jnp
from jax.experimental import pallas as pl
from jax.experimental.pallas import tpu as pltpu

_LANES = 128
# (4096, 128) f32 = 2 MiB per buffer; in+out double-buffered ~= 8 MiB, which
# fits the default scoped VMEM limit on v5e/v6e/v7x while sitting on the HBM
# roofline plateau for elementwise kernels.
_MAX_BLOCK_ROWS = 4096


def _dropout_kernel(seed_ref, x_ref, o_ref, *, threshold, scale, block_rows):
    br, lanes = x_ref.shape

    # Global element index for every element of this block (uint32).
    row = jax.lax.broadcasted_iota(jnp.uint32, (br, lanes), 0)
    col = jax.lax.broadcasted_iota(jnp.uint32, (br, lanes), 1)
    base = (pl.program_id(0) * block_rows).astype(jnp.uint32) * jnp.uint32(lanes)
    idx = base + row * jnp.uint32(lanes) + col

    # Counter-based hash: splitmix32-style finalizer of (index, seed) gives a
    # ~uniform uint32 per element.  Pure VPU integer ops.
    seed = seed_ref[0].astype(jnp.uint32)
    h = idx + seed * jnp.uint32(0x9E3779B9)
    h = h ^ (h >> jnp.uint32(16))
    h = h * jnp.uint32(0x21F0AAAD)
    h = h ^ (h >> jnp.uint32(15))
    h = h * jnp.uint32(0x735A2D97)
    h = h ^ (h >> jnp.uint32(15))

    # Keep with probability (1 - p): direct integer threshold compare.
    keep = h >= jnp.uint32(threshold)

    x = x_ref[...]
    o_ref[...] = jnp.where(
        keep, x * jnp.asarray(scale, x.dtype), jnp.zeros((), x.dtype)
    ).astype(o_ref.dtype)


def lrp_dropout(x, p, *, seed=0, training=True):
    """Forward of LRP_DropOut: nn.Dropout(p)(x)."""
    if (not training) or p == 0.0:
        # Eval mode / p == 0: dropout is the identity -- no kernel, no copies.
        return x
    if p >= 1.0:
        return jnp.zeros_like(x)

    orig_shape = x.shape
    orig_dtype = x.dtype
    n = x.size

    # Lane-pad to a multiple of 128 only when needed (NCHW activations are
    # usually already aligned); a partial last *block* is handled by Pallas
    # boundary padding, so no 8*128 padding is required.
    rows = pl.cdiv(n, _LANES)
    n_pad = rows * _LANES
    x_flat = jnp.reshape(x, (-1,))
    if n_pad != n:
        x_flat = jnp.concatenate(
            [x_flat, jnp.zeros((n_pad - n,), dtype=orig_dtype)], axis=0
        )
    x2d = jnp.reshape(x_flat, (rows, _LANES))

    block_rows = min(rows, _MAX_BLOCK_ROWS)
    grid = (pl.cdiv(rows, block_rows),)

    scale = 1.0 / (1.0 - float(p))
    threshold = min(int(round(float(p) * 2.0 ** 32)), 0xFFFFFFFF)
    seed_arr = jnp.asarray([seed], dtype=jnp.int32)

    out2d = pl.pallas_call(
        functools.partial(
            _dropout_kernel,
            threshold=threshold,
            scale=scale,
            block_rows=block_rows,
        ),
        out_shape=jax.ShapeDtypeStruct((rows, _LANES), orig_dtype),
        grid=grid,
        in_specs=[
            pl.BlockSpec(memory_space=pltpu.MemorySpace.SMEM),        # seed scalar
            pl.BlockSpec((block_rows, _LANES), lambda i: (i, 0)),     # x tile
        ],
        out_specs=pl.BlockSpec((block_rows, _LANES), lambda i: (i, 0)),
        compiler_params=pltpu.CompilerParams(
            dimension_semantics=("parallel",),
        ),
    )(seed_arr, x2d)

    out_flat = jnp.reshape(out2d, (-1,))
    if n_pad != n:
        out_flat = out_flat[:n]
    return jnp.reshape(out_flat, orig_shape)


def lrp_dropout_relprop(R):
    # relprop(R) = R  (identity, no kernel needed)
    return R


if __name__ == "__main__":
    key = jax.random.PRNGKey(0)
    # NCHW, small shapes: batch=2, channels=4, spatial=16x16
    x = jax.random.normal(key, (2, 4, 16, 16), dtype=jnp.float32)
    p = 0.3

    out = lrp_dropout(x, p, seed=1234, training=True)
    out = jax.block_until_ready(out)

    # Sanity checks against nn.Dropout semantics (training mode):
    assert out.shape == x.shape and out.dtype == x.dtype
    scale = 1.0 / (1.0 - p)
    kept = out != 0.0
    # Every surviving element must equal x * 1/(1-p).
    max_err = jnp.max(jnp.where(kept, jnp.abs(out - x * scale), 0.0))
    assert float(max_err) < 1e-5, float(max_err)
    # Keep rate should be roughly (1 - p).
    keep_rate = float(jnp.mean(kept.astype(jnp.float32)))
    assert abs(keep_rate - (1.0 - p)) < 0.1, keep_rate

    # Different seeds -> different masks.
    out2 = jax.block_until_ready(lrp_dropout(x, p, seed=4321, training=True))
    assert not bool(jnp.array_equal(out, out2))

    # Eval-mode path (identity) + relprop identity.
    out_eval = jax.block_until_ready(lrp_dropout(x, p, training=False))
    assert bool(jnp.allclose(out_eval, x))
    assert bool(jnp.allclose(lrp_dropout_relprop(x), x))

    print("KERNEL_OK")
</pallas_src>

<mosaic_0001>
module attributes {stable_mosaic.version = 11 : i64} {
  func.func @_dropout_kernel(%arg0: i32, %arg1: memref<1xi32, #tpu.memory_space<smem>>, %arg2: memref<16x128xf32, #tpu.memory_space<vmem>>, %arg3: memref<16x128xf32, #tpu.memory_space<vmem>>) attributes {dimension_semantics = [#tpu.dimension_semantics<parallel>], iteration_bounds = array<i64: 1>, scalar_prefetch = 0 : i64, scratch_operands = 0 : i64, tpu.core_type = #tpu.core_type<tc>, window_params = [{transform_indices = @transform_0, window_bounds = array<i64: 1>}, {transform_indices = @transform_1, window_bounds = array<i64: 16, 128>}, {transform_indices = @transform_2, window_bounds = array<i64: 16, 128>}]} {
    %0 = tpu.iota {dimensions = array<i32: 0>} : vector<16x128xi32>
    %1 = tpu.iota {dimensions = array<i32: 1>} : vector<16x128xi32>
    %c16_i32 = arith.constant 16 : i32
    %2 = arith.muli %arg0, %c16_i32 : i32
    %c128_i32 = arith.constant 128 : i32
    %3 = arith.muli %2, %c128_i32 : i32
    %c128_i32_0 = arith.constant 128 : i32
    %4 = vector.broadcast %c128_i32_0 : i32 to vector<16x128xi32>
    %5 = arith.muli %0, %4 : vector<16x128xi32>
    %6 = vector.broadcast %3 : i32 to vector<16x128xi32>
    %7 = arith.addi %6, %5 : vector<16x128xi32>
    %8 = arith.addi %7, %1 : vector<16x128xi32>
    %c0 = arith.constant 0 : index
    %9 = memref.load %arg1[%c0] : memref<1xi32, #tpu.memory_space<smem>>
    %c-1640531527_i32 = arith.constant -1640531527 : i32
    %10 = arith.muli %9, %c-1640531527_i32 : i32
    %11 = vector.broadcast %10 : i32 to vector<16x128xi32>
    %12 = arith.addi %8, %11 : vector<16x128xi32>
    %c16_i32_1 = arith.constant 16 : i32
    %13 = vector.broadcast %c16_i32_1 : i32 to vector<16x128xi32>
    %14 = arith.shrui %12, %13 : vector<16x128xi32>
    %15 = arith.xori %12, %14 : vector<16x128xi32>
    %c569420461_i32 = arith.constant 569420461 : i32
    %16 = vector.broadcast %c569420461_i32 : i32 to vector<16x128xi32>
    %17 = arith.muli %15, %16 : vector<16x128xi32>
    %c15_i32 = arith.constant 15 : i32
    %18 = vector.broadcast %c15_i32 : i32 to vector<16x128xi32>
    %19 = arith.shrui %17, %18 : vector<16x128xi32>
    %20 = arith.xori %17, %19 : vector<16x128xi32>
    %c1935289751_i32 = arith.constant 1935289751 : i32
    %21 = vector.broadcast %c1935289751_i32 : i32 to vector<16x128xi32>
    %22 = arith.muli %20, %21 : vector<16x128xi32>
    %c15_i32_2 = arith.constant 15 : i32
    %23 = vector.broadcast %c15_i32_2 : i32 to vector<16x128xi32>
    %24 = arith.shrui %22, %23 : vector<16x128xi32>
    %25 = arith.xori %22, %24 : vector<16x128xi32>
    %c1288490189_i32 = arith.constant 1288490189 : i32
    %26 = vector.broadcast %c1288490189_i32 : i32 to vector<16x128xi32>
    %27 = arith.cmpi uge, %25, %26 : vector<16x128xi32>
    %c0_3 = arith.constant 0 : index
    %c0_4 = arith.constant 0 : index
    %28 = vector.load %arg2[%c0_3, %c0_4] : memref<16x128xf32, #tpu.memory_space<vmem>>, vector<16x128xf32>
    %cst = arith.constant 1.42857146 : f32
    %29 = vector.broadcast %cst : f32 to vector<16x128xf32>
    %30 = arith.mulf %28, %29 : vector<16x128xf32>
    %cst_5 = arith.constant 0.000000e+00 : f32
    %31 = vector.broadcast %cst_5 : f32 to vector<16x128xf32>
    %32 = arith.select %27, %30, %31 : vector<16x128xi1>, vector<16x128xf32>
    %c0_6 = arith.constant 0 : index
    %c0_7 = arith.constant 0 : index
    %33 = vector.load %arg3[%c0_6, %c0_7] : memref<16x128xf32, #tpu.memory_space<vmem>>, vector<16x128xf32>
    tpu.vector_store %arg3[%c0_6, %c0_7], %32 {strides = array<i32>} : memref<16x128xf32, #tpu.memory_space<vmem>>, vector<16x128xf32>,
    return
  }
  func.func @transform_0(%arg0: i32) -> i32 {
    %c0_i32 = arith.constant 0 : i32
    %c0_i32_0 = arith.constant 0 : i32
    return %c0_i32 : i32
  }
  func.func @transform_1(%arg0: i32) -> (i32, i32) {
    %c0_i32 = arith.constant 0 : i32
    %c0_i32_0 = arith.constant 0 : i32
    return %arg0, %c0_i32 : i32, i32
  }
  func.func @transform_2(%arg0: i32) -> (i32, i32) {
    %c0_i32 = arith.constant 0 : i32
    %c0_i32_0 = arith.constant 0 : i32
    return %arg0, %c0_i32 : i32, i32
  }
}

</mosaic_0001>

<llo_original>
// kernel: tpu_custom_call.1
$region0: #{tpu_custom_call.1}
  #allocation0 [shape = 'u32[]', space=smem, size = 0x4, offset = 0x4, fixed_abs, tag = 'smem constant byte address 0x4 - core index']
  #allocation1 [shape = 'u32[144,128]{1,0:T(1,128)}', space=vmem, size = 0x12000, scoped, tag = 'internal scratch']
  #allocation2 [shape = 's32[1]{0:T(128)S(6)}', space=smem, size = 0x200, scoped, tag = 'scoped memory for tpu_custom_call.1']
  %s0 = inlined_call_operand.<no memory space> [shape: s32[1], index: 0, kind: input, shape index: {}]
  %s1 = inlined_call_operand.hbm [shape: f32[16,128], index: 1, kind: input, shape index: {}]
  %s2 = inlined_call_operand.hbm [shape: f32[16,128], index: 2, kind: output, shape index: {}]
  %s3 = sld [smem:[#allocation0]]
  $region22: #{tpu_custom_call.1} parent=0
    _
  %s5 = ssub.s32 1, %s3
  %s6 = scalar_select 0, %s5, %s3
  %7 = sst [smem:[#allocation2]] %s0
  $region1: #{tpu_custom_call.1} parent=0
    #allocation3 [shape = 'u8[8192]{0}', space=vmem, size = 0x2000, scoped, tag = 'input window, operand 1, single buffered']
    #allocation4 [shape = 's32[1]{0}', space=sflag, size = 0x4, scoped, tag = 'scoped memory for tpu_custom_call.1']
    #allocation5 [shape = 's32[1]{0}', space=sflag, size = 0x4, scoped, tag = 'scoped memory for tpu_custom_call.1']
    #allocation6 [shape = 'u8[8192]{0}', space=vmem, size = 0x2000, scoped, tag = 'output window, operand 0, single buffered']
    %8 = vsyncpa [#allocation4], 0
    %9 = vsyncpa [#allocation5], 0
    // Predicated region
    $region2: #{tpu_custom_call.1} parent=1 // pred_check
      _
    $region3: #{tpu_custom_call.1} parent=1 // pred_check_branch
      %11 = sbr.rel (0) target = $region5
    $region4: #{tpu_custom_call.1} parent=1 // pred_region
      _
    $region5: #{tpu_custom_call.1} parent=1 // pred_fallthru
      _
    // Predicated region
    $region6: #{tpu_custom_call.1} parent=1 // pred_check
      _
    $region7: #{tpu_custom_call.1} parent=1 // pred_check_branch
      %13 = sbr.rel (0) target = $region9
    $region8: #{tpu_custom_call.1} parent=1 // pred_region
      %s15 = ssub.s32 256, 256
      %16 = vsyncadd [#allocation4], %s15
      %s17 = sshll.u32 [#allocation3], 4
      %s18 = int_to_ptr.vmem [resolvable:$true] %s17
      %23 = dma.hbm_to_vmem [thread:$0]  %s1, 256, %s18, [#allocation4], 128, 128, 8
    $region9: #{tpu_custom_call.1} parent=1 // pred_fallthru
      _
    // Predicated region
    $region10: #{tpu_custom_call.1} parent=1 // pred_check
      _
    $region11: #{tpu_custom_call.1} parent=1 // pred_check_branch
      %25 = sbr.rel (0) target = $region13
    $region12: #{tpu_custom_call.1} parent=1 // pred_region
      %26 = dma.done [#allocation4], 256
    $region13: #{tpu_custom_call.1} parent=1 // pred_fallthru
      _
    %v27 = vlaneseq
    %v28 = vshrl.u32 %v27, 7
    %v29 = vadd.s32 %v28, 8
    %v30 = vlaneseq
    %v31 = vand.u32 %v30, 127
    %s32 = smul.u32 0, 2048
    %v33 = vmul.u32 %v28, 128
    %v34 = vmul.u32 %v29, 128
    %v35 = vstv %s32
    %v36 = vadd.s32 %v35, %v33
    %v37 = vadd.s32 %v35, %v34
    %v38 = vadd.s32 %v36, %v31
    %v39 = vadd.s32 %v37, %v31
    %s40 = sld [smem:[#allocation2]]
    %s41 = smul.u32 %s40, 2654435769
    %v42 = vstv %s41
    %v43 = vadd.s32 %v38, %v42
    %v44 = vadd.s32 %v39, %v42
    %v45 = vshrl.u32 %v43, 16
    %v46 = vshrl.u32 %v44, 16
    %v47 = vxor.u32 %v43, %v45
    %v48 = vxor.u32 %v44, %v46
    %v49 = vmul.u32 %v47, 569420461
    %v50 = vmul.u32 %v48, 569420461
    %v51 = vshrl.u32 %v49, 15
    %v52 = vshrl.u32 %v50, 15
    %v53 = vxor.u32 %v49, %v51
    %v54 = vxor.u32 %v50, %v52
    %v55 = vmul.u32 %v53, 1935289751
    %v56 = vmul.u32 %v54, 1935289751
    %v57 = vshrl.u32 %v55, 15
    %v58 = vshrl.u32 %v56, 15
    %v59 = vxor.u32 %v55, %v57
    %v60 = vxor.u32 %v56, %v58
    %vm61 = vcmp.ge.u32.totalorder %v59, 1288490189
    %vm62 = vcmp.ge.u32.totalorder %v60, 1288490189
    %v63 = vld [vmem:[#allocation3] sm:$0xff]
    %v64 = vld [vmem:[#allocation3 + $0x8] sm:$0xff]
    %v65 = vmul.f32 %v63, 1.4285715
    %v66 = vmul.f32 %v64, 1.4285715
    %v67 = vsel %vm61, %v65, 0.0
    %v68 = vsel %vm62, %v66, 0.0
    %69 = vst [vmem:[#allocation6] sm:$0xff] %v67
    %70 = vst [vmem:[#allocation6 + $0x8] sm:$0xff] %v68
    // Predicated region
    $region14: #{tpu_custom_call.1} parent=1 // pred_check
      _
    $region15: #{tpu_custom_call.1} parent=1 // pred_check_branch
      %72 = sbr.rel (0) target = $region17
    $region16: #{tpu_custom_call.1} parent=1 // pred_region
      %s74 = ssub.s32 256, 256
      %75 = vsyncadd [#allocation5], %s74
      %s76 = sshll.u32 [#allocation6], 4
      %s77 = int_to_ptr.vmem [resolvable:$true] %s76
      %82 = dma.vmem_to_hbm [thread:$0]  %s77, 256, %s2, [#allocation5], 128, 128, 8
    $region17: #{tpu_custom_call.1} parent=1 // pred_fallthru
      _
    // Predicated region
    $region18: #{tpu_custom_call.1} parent=1 // pred_check
      _
    $region19: #{tpu_custom_call.1} parent=1 // pred_check_branch
      %84 = sbr.rel (0) target = $region21
    $region20: #{tpu_custom_call.1} parent=1 // pred_region
      %85 = dma.done [#allocation5], 256
    $region21: #{tpu_custom_call.1} parent=1 // pred_fallthru
      _
    %86 = vsyncpa [#allocation4], 1
    %87 = vsyncpa [#allocation5], 1

</llo_original>
